<compile_context>
chip_gen: v6e
topology: v6e:2x2x1
jax: 0.10.0
libtpu: 0.0.40
codegen_flags: <defaults>
</compile_context>

<pallas_src>
import jax
import jax.numpy as jnp
from jax.experimental import pallas as pl
from jax.experimental.pallas import tpu as pltpu


# ----------------------------- kernels --------------------------------------

def _pool_rows_kernel(pm_ref, x_ref, o_ref):
    """Row-blocked path: x_ref (tc, tho, s*W), pm_ref (s*W, Wo), o (tc, tho, Wo)."""
    tc, tho, k = x_ref.shape
    wo = o_ref.shape[-1]
    x2 = x_ref[...].reshape(tc * tho, k)                      # lanes unchanged
    pooled = jnp.dot(x2, pm_ref[...], preferred_element_type=jnp.float32)
    o_ref[...] = pooled.reshape(tc, tho, wo).astype(o_ref.dtype)


def _pool_flat_kernel(pm_ref, x_ref, o_ref):
    """Small-map path: x_ref (tc, H*W), pm_ref (H*W, Ho*Wo), o_ref (tc, Ho*Wo)."""
    pooled = jnp.dot(x_ref[...], pm_ref[...], preferred_element_type=jnp.float32)
    o_ref[...] = pooled.astype(o_ref.dtype)


# ------------------------ pooling matrices (wrapper) -------------------------

def _pool_matrix_rows(W, s, dtype):
    """P[r*W + w, wo] = 1/s^2  iff  w // s == wo   (for every r in [0, s))."""
    K, Wo = s * W, W // s
    col = jax.lax.broadcasted_iota(jnp.int32, (K, Wo), 0) % W
    dst = jax.lax.broadcasted_iota(jnp.int32, (K, Wo), 1)
    return jnp.where(col // s == dst, 1.0 / (s * s), 0.0).astype(dtype)


def _pool_matrix_flat(H, W, s, dtype):
    """P[h*W + w, ho*Wo + wo] = 1/s^2  iff  h//s == ho and w//s == wo."""
    Ho, Wo = H // s, W // s
    src = jax.lax.broadcasted_iota(jnp.int32, (H * W, Ho * Wo), 0)
    dst = jax.lax.broadcasted_iota(jnp.int32, (H * W, Ho * Wo), 1)
    h, w = src // W, src % W
    ho, wo = dst // Wo, dst % Wo
    hit = (h // s == ho) & (w // s == wo)
    return jnp.where(hit, 1.0 / (s * s), 0.0).astype(dtype)


# ----------------------------- tile choosers ---------------------------------

def _divisors(n):
    return [d for d in range(1, n + 1) if n % d == 0]


def _choose_tiles_rows(N, C, Ho, K, itemsize, target_bytes, min_steps):
    """(tc, tho) with C%tc==0, Ho%tho==0, tho 8-aligned (or ==Ho), ~target bytes,
    and the grid kept at >= min_steps steps when the problem allows it."""
    if Ho % 8 == 0:
        tho_opts = [d for d in _divisors(Ho) if d % 8 == 0]
    else:
        tho_opts = [Ho]                     # full-dim block; legal, just slower
    tc_opts = _divisors(C)
    base_grid = N * (C // tc_opts[0]) * (Ho // tho_opts[0])
    need_steps = min(min_steps, base_grid)

    best = (tc_opts[0], tho_opts[0])
    best_bytes = best[0] * best[1] * K * itemsize
    for tho in tho_opts:
        for tc in tc_opts:
            b = tc * tho * K * itemsize
            steps = N * (C // tc) * (Ho // tho)
            if b <= target_bytes and steps >= need_steps and b > best_bytes:
                best, best_bytes = (tc, tho), b
    return best


def _choose_tile_flat(N, C, HW, itemsize, target_bytes, min_steps):
    """Channel tile tc with C%tc==0 and tc 8-aligned (or ==C)."""
    if C % 8 == 0:
        tc_opts = [d for d in _divisors(C) if d % 8 == 0]
    else:
        tc_opts = [C]
    base_grid = N * (C // tc_opts[0])
    need_steps = min(min_steps, base_grid)

    best = tc_opts[0]
    best_bytes = best * HW * itemsize
    for tc in tc_opts:
        b = tc * HW * itemsize
        steps = N * (C // tc)
        if b <= target_bytes and steps >= need_steps and b > best_bytes:
            best = tc
            best_bytes = b
    return best


# ------------------------------- wrapper --------------------------------------

def average_pooling_layer(x_nchw: jax.Array, scale_factor: int = 2, *,
                          target_block_bytes: int = 6 * 1024 * 1024,
                          flat_matrix_max_bytes: int = 2 * 1024 * 1024,
                          min_grid_steps: int = 8) -> jax.Array:
    """avg_pool2d(kernel=stride=scale_factor, padding=0) on NCHW input."""
    N, C, H, W = x_nchw.shape
    s = int(scale_factor)
    Ho, Wo = H // s, W // s
    assert Ho > 0 and Wo > 0, "feature map smaller than the pooling window"

    # padding=0 semantics: trailing rows/cols without a full window are dropped.
    if H != Ho * s or W != Wo * s:
        x_nchw = x_nchw[:, :, :Ho * s, :Wo * s]
        H, W = Ho * s, Wo * s

    if not jnp.issubdtype(x_nchw.dtype, jnp.floating):
        x_nchw = x_nchw.astype(jnp.float32)     # avg-pool of integer maps -> f32
    dtype = x_nchw.dtype
    itemsize = jnp.dtype(dtype).itemsize

    flat_mat_bytes = (H * W) * (Ho * Wo) * itemsize
    use_flat = (Wo < 128) and (flat_mat_bytes <= flat_matrix_max_bytes)

    if use_flat:
        # ---- small-map path: fully flattened spatial dims (lane-dense I/O) ----
        HW, HoWo = H * W, Ho * Wo
        x_op = x_nchw.reshape(N, C, HW)
        pm = _pool_matrix_flat(H, W, s, dtype)
        tc = _choose_tile_flat(N, C, HW, itemsize, target_block_bytes,
                               min_grid_steps)
        grid = (N, C // tc)
        in_block = tc * HW * itemsize
        out_block = tc * HoWo * itemsize
        flops = 2 * N * C * HoWo * HW
        kernel = _pool_flat_kernel
        in_specs = [
            pl.BlockSpec((HW, HoWo), lambda n, c: (0, 0)),          # resident
            pl.BlockSpec((None, tc, HW), lambda n, c: (n, c, 0)),
        ]
        out_specs = pl.BlockSpec((None, tc, HoWo), lambda n, c: (n, c, 0))
        out_shape = jax.ShapeDtypeStruct((N, C, HoWo), dtype)
        dim_sem = ("parallel", "parallel")
    else:
        # ---- general path: (N, C, Ho, s*W) rows, one (s*W, Wo) MXU matmul ----
        K = s * W
        x_op = x_nchw.reshape(N, C, Ho, K)                          # free reshape
        pm = _pool_matrix_rows(W, s, dtype)
        tc, tho = _choose_tiles_rows(N, C, Ho, K, itemsize,
                                     target_block_bytes, min_grid_steps)
        grid = (N, C // tc, Ho // tho)
        in_block = tc * tho * K * itemsize
        out_block = tc * tho * Wo * itemsize
        flops = 2 * N * C * Ho * Wo * K
        kernel = _pool_rows_kernel
        in_specs = [
            pl.BlockSpec((K, Wo), lambda n, c, h: (0, 0)),          # resident
            pl.BlockSpec((None, tc, tho, K), lambda n, c, h: (n, c, h, 0)),
        ]
        out_specs = pl.BlockSpec((None, tc, tho, Wo), lambda n, c, h: (n, c, h, 0))
        out_shape = jax.ShapeDtypeStruct((N, C, Ho, Wo), dtype)
        dim_sem = ("parallel", "parallel", "parallel")

    pm_bytes = int(pm.size) * itemsize
    # Double-buffered input + output, pool matrix (counted twice for safety),
    # plus a little headroom.  Capped so it is safe on v7x's 64 MiB VMEM.
    vmem_need = 2 * (in_block + out_block) + 2 * pm_bytes + (2 << 20)
    vmem_limit = int(min(max(vmem_need, 32 << 20), 64 << 20))

    bytes_accessed = (N * C * H * W + N * C * Ho * Wo) * itemsize + pm_bytes
    cost = pl.CostEstimate(flops=flops, transcendentals=0,
                           bytes_accessed=bytes_accessed)

    out = pl.pallas_call(
        kernel,
        out_shape=out_shape,
        grid_spec=pltpu.PrefetchScalarGridSpec(
            num_scalar_prefetch=0,
            grid=grid,
            in_specs=in_specs,
            out_specs=out_specs,
        ),
        compiler_params=pltpu.CompilerParams(
            dimension_semantics=dim_sem,
            vmem_limit_bytes=vmem_limit,
        ),
        cost_estimate=cost,
    )(pm, x_op)

    if use_flat:
        out = out.reshape(N, C, Ho, Wo)
    return out


# ------------------------------ reference ------------------------------------

def _reference_avg_pool(x_nchw: jax.Array, s: int) -> jax.Array:
    N, C, H, W = x_nchw.shape
    Ho, Wo = H // s, W // s
    xr = x_nchw[:, :, :Ho * s, :Wo * s].astype(jnp.float32)
    xr = xr.reshape(N, C, Ho, s, Wo, s)
    return jnp.mean(xr, axis=(3, 5)).astype(x_nchw.dtype)


if __name__ == "__main__":
    key = jax.random.PRNGKey(0)
    k1, k2, k3 = jax.random.split(key, 3)

    # Case 1: module-sized NCHW input -> flattened small-map (lane-dense) path.
    x1 = jax.random.normal(k1, (2, 4, 16, 16), dtype=jnp.float32)
    out1 = jax.block_until_ready(average_pooling_layer(x1, scale_factor=2))
    ref1 = _reference_avg_pool(x1, 2)
    assert out1.shape == (2, 4, 8, 8), out1.shape
    assert jnp.allclose(out1, ref1, atol=1e-5, rtol=1e-5), "mismatch (case 1)"

    # Case 2: wide feature map -> row-blocked MXU pooling path (pipelined grid).
    x2 = jax.random.normal(k2, (2, 8, 64, 256), dtype=jnp.float32)
    out2 = jax.block_until_ready(average_pooling_layer(x2, scale_factor=2))
    ref2 = _reference_avg_pool(x2, 2)
    assert out2.shape == (2, 8, 32, 128), out2.shape
    assert jnp.allclose(out2, ref2, atol=1e-5, rtol=1e-5), "mismatch (case 2)"

    # Case 3: bf16 stays bf16 on the MXU with f32 accumulation.
    x3 = jax.random.normal(k3, (2, 16, 24, 24), dtype=jnp.bfloat16)
    out3 = jax.block_until_ready(average_pooling_layer(x3, scale_factor=2))
    ref3 = _reference_avg_pool(x3, 2)
    assert out3.shape == (2, 16, 12, 12), out3.shape
    assert jnp.allclose(out3.astype(jnp.float32), ref3.astype(jnp.float32),
                        atol=2e-2, rtol=2e-2), "mismatch (case 3)"

    print("KERNEL_OK")
</pallas_src>

<mosaic_0001>
module attributes {stable_mosaic.version = 11 : i64} {
  func.func @_pool_flat_kernel(%arg0: i32, %arg1: i32, %arg2: memref<256x64xf32, #tpu.memory_space<vmem>>, %arg3: memref<1x4x256xf32, #tpu.memory_space<vmem>>, %arg4: memref<1x4x64xf32, #tpu.memory_space<vmem>>) attributes {dimension_semantics = [#tpu.dimension_semantics<parallel>, #tpu.dimension_semantics<parallel>], iteration_bounds = array<i64: 2, 1>, scalar_prefetch = 0 : i64, scratch_operands = 0 : i64, tpu.core_type = #tpu.core_type<tc>, window_params = [{pipeline_mode = #tpu.pipeline_mode<synchronous>, transform_indices = @transform_0, window_bounds = array<i64: 256, 64>}, {transform_indices = @transform_1, window_bounds = array<i64: 1, 4, 256>}, {transform_indices = @transform_2, window_bounds = array<i64: 1, 4, 64>}]} {
    %c0 = arith.constant 0 : index
    %c0_0 = arith.constant 0 : index
    %c0_1 = arith.constant 0 : index
    %0 = vector.load %arg3[%c0, %c0_0, %c0_1] : memref<1x4x256xf32, #tpu.memory_space<vmem>>, vector<1x4x256xf32>
    %1 = vector.shape_cast %0 : vector<1x4x256xf32> to vector<4x256xf32>
    %c0_2 = arith.constant 0 : index
    %c0_3 = arith.constant 0 : index
    %2 = vector.load %arg2[%c0_2, %c0_3] : memref<256x64xf32, #tpu.memory_space<vmem>>, vector<256x64xf32>
    %cst = arith.constant dense<0.000000e+00> : vector<4x64xf32>
    %3 = tpu.matmul %1, %2, %cst {dimension_numbers = #tpu.dot_dimension_numbers<[1], [0], [0], [1], [0, 0, 1, 1], [], []>} : vector<4x256xf32>, vector<256x64xf32>, vector<4x64xf32> -> vector<4x64xf32>
    %c0_4 = arith.constant 0 : index
    %c0_5 = arith.constant 0 : index
    %c0_6 = arith.constant 0 : index
    %4 = vector.load %arg4[%c0_4, %c0_5, %c0_6] : memref<1x4x64xf32, #tpu.memory_space<vmem>>, vector<1x4x64xf32>
    %5 = vector.shape_cast %4 : vector<1x4x64xf32> to vector<4x64xf32>
    %6 = vector.shape_cast %3 : vector<4x64xf32> to vector<1x4x64xf32>
    tpu.vector_store %arg4[%c0_4, %c0_5, %c0_6], %6 {strides = array<i32>} : memref<1x4x64xf32, #tpu.memory_space<vmem>>, vector<1x4x64xf32>,
    return
  }
  func.func @transform_0(%arg0: i32, %arg1: i32) -> (i32, i32) {
    %c0_i32 = arith.constant 0 : i32
    %c0_i32_0 = arith.constant 0 : i32
    %c0_i32_1 = arith.constant 0 : i32
    return %c0_i32, %c0_i32_0 : i32, i32
  }
  func.func @transform_1(%arg0: i32, %arg1: i32) -> (i32, i32, i32) {
    %c0_i32 = arith.constant 0 : i32
    %c0_i32_0 = arith.constant 0 : i32
    return %arg0, %arg1, %c0_i32 : i32, i32, i32
  }
  func.func @transform_2(%arg0: i32, %arg1: i32) -> (i32, i32, i32) {
    %c0_i32 = arith.constant 0 : i32
    %c0_i32_0 = arith.constant 0 : i32
    return %arg0, %arg1, %c0_i32 : i32, i32, i32
  }
}

</mosaic_0001>

<llo_original>
// kernel: tpu_custom_call.1
$region0: #{tpu_custom_call.1}
  #allocation0 [shape = 'u32[]', space=smem, size = 0x4, offset = 0x4, fixed_abs, tag = 'smem constant byte address 0x4 - core index']
  #allocation1 [shape = 'u32[144,128]{1,0:T(1,128)}', space=vmem, size = 0x12000, scoped, tag = 'internal scratch']
  %s0 = inlined_call_operand.vmem [shape: f32[256,64], index: 0, kind: input, shape index: {}]
  %s1 = inlined_call_operand.vmem [shape: f32[2,4,256], index: 1, kind: input, shape index: {}]
  %s2 = inlined_call_operand.hbm [shape: f32[2,4,64], index: 2, kind: output, shape index: {}]
  %s3 = sld [smem:[#allocation0]]
  $region41: #{tpu_custom_call.1} parent=0
    _
  %s5 = ssub.s32 1, %s3
  %s6 = scalar_select 0, %s5, %s3
  $region1: #{tpu_custom_call.1} parent=0
    #allocation2 [shape = 'u8[4096]{0}', space=vmem, size = 0x1000, scoped, tag = 'output window, operand 0']
    #allocation3 [shape = 's32[2]{0}', space=sflag, size = 0x8, scoped, tag = 'scoped memory for tpu_custom_call.1']
    %7 = vsyncpa [#allocation3], 0
    %s8 = scalar_lea.sflag [#allocation3], 1
    %9 = vsyncpa %s8, 0
    loop: start=0, step=1, limit=4
    $region2: #{tpu_custom_call.1} parent=1 // loop_pre_header
      _
    $region3: #{tpu_custom_call.1} parent=1 // loop_header
      %s11 = sphi 0, %s15
      %p12 = scmp.ge.s32.totalorder %s11, 4
      %s18 = sphi 0, %s30
      %s19 = sphi 0, %s26
      %s20 = sphi 0, %s18
      %s21 = sphi 0, %s19
      %s22 = sphi 0, %s20
      %s23 = sphi 0, %s21
      %s31 = sphi 0, %s31
      %s33 = sphi 0, %s31
      %s34 = sphi 0, %s33
      %s48 = sphi 0, %s34
      %s56 = sphi 0, %s58
      %s59 = sphi 0, %s56
      %s60 = sphi 0, %s59
      %s76 = sphi 0, %s60
      %s84 = sphi 0, %s86
      %s87 = sphi 0, %s84
      %s88 = sphi 0, %s87
      %s104 = sphi 0, %s88
    $region4: #{tpu_custom_call.1} parent=1 // loop_header_branch
      %14 = sbr.rel (%p12) target = $region8
    $region5: #{tpu_custom_call.1} parent=1 // loop_body
      %s16 = ssub.s32 %s11, 1
      %s17 = ssub.s32 %s11, 2
      %s24 = sadd.s32 1, %s19
      %p25 = scmp.ge.s32.totalorder %s24, 1
      %s26 = scalar_select %p25, 0, %s24
      %s27 = sadd.s32 1, %s18
      %s28 = scalar_select %p25, %s27, %s18
      %p29 = scmp.ge.s32.totalorder %s28, 2
      %s30 = scalar_select %p29, 0, %s28
      %s32 = sadd.s32 %s31, 1
      %p35 = scmp.eq.s32.totalorder %s11, 1
      %p36 = scmp.ne.s32.totalorder %s31, %s33
      %p37 = scmp.eq.s32.totalorder %s11, 0
      %p38 = por %p36, %p37
      %p39 = scmp.ne.s32.totalorder %s31, %s33
      %p40 = scmp.eq.s32.totalorder %s16, 1
      %p41 = por %p39, %p40
      %p42 = scmp.ne.s32.totalorder %s33, %s34
      %p43 = scmp.eq.s32.totalorder %s16, 0
      %p44 = por %p42, %p43
      %p45 = scmp.ne.s32.totalorder %s33, %s34
      %p46 = scmp.eq.s32.totalorder %s17, 1
      %p47 = por %p45, %p46
      %p49 = scmp.ne.s32.totalorder %s34, %s48
      %p50 = scmp.eq.s32.totalorder %s17, 0
      %p51 = por %p49, %p50
      %s52 = ssub.s32 %s18, %s30
      %s53 = ssub.s32 %s19, %s26
      %s54 = sor.u32 %s52, %s53
      %p55 = scmp.eq.s32.totalorder %s54, 0
      %s57 = sadd.s32 %s56, 1
      %s58 = scalar_select %p55, %s56, %s57
      %p61 = pneg %p55
      %p62 = scmp.eq.s32.totalorder %s11, 1
      %p63 = por %p61, %p62
      %p64 = scmp.ne.s32.totalorder %s56, %s59
      %p65 = scmp.eq.s32.totalorder %s11, 0
      %p66 = por %p64, %p65
      %p67 = scmp.ne.s32.totalorder %s56, %s59
      %p68 = scmp.eq.s32.totalorder %s16, 1
      %p69 = por %p67, %p68
      %p70 = scmp.ne.s32.totalorder %s59, %s60
      %p71 = scmp.eq.s32.totalorder %s16, 0
      %p72 = por %p70, %p71
      %p73 = scmp.ne.s32.totalorder %s59, %s60
      %p74 = scmp.eq.s32.totalorder %s17, 1
      %p75 = por %p73, %p74
      %p77 = scmp.ne.s32.totalorder %s60, %s76
      %p78 = scmp.eq.s32.totalorder %s17, 0
      %p79 = por %p77, %p78
      %s80 = ssub.s32 %s18, %s30
      %s81 = ssub.s32 %s19, %s26
      %s82 = sor.u32 %s80, %s81
      %p83 = scmp.eq.s32.totalorder %s82, 0
      %s85 = sadd.s32 %s84, 1
      %s86 = scalar_select %p83, %s84, %s85
      %p89 = pneg %p83
      %p90 = scmp.eq.s32.totalorder %s11, 1
      %p91 = por %p89, %p90
      %p92 = scmp.ne.s32.totalorder %s84, %s87
      %p93 = scmp.eq.s32.totalorder %s11, 0
      %p94 = por %p92, %p93
      %p95 = scmp.ne.s32.totalorder %s84, %s87
      %p96 = scmp.eq.s32.totalorder %s16, 1
      %p97 = por %p95, %p96
      %p98 = scmp.ne.s32.totalorder %s87, %s88
      %p99 = scmp.eq.s32.totalorder %s16, 0
      %p100 = por %p98, %p99
      %p101 = scmp.ne.s32.totalorder %s87, %s88
      %p102 = scmp.eq.s32.totalorder %s17, 1
      %p103 = por %p101, %p102
      %p105 = scmp.ne.s32.totalorder %s88, %s104
      %p106 = scmp.eq.s32.totalorder %s17, 0
      %p107 = por %p105, %p106
      %p108 = scmp.le.s32.totalorder 1, %s11
      %p109 = scmp.lt.s32.totalorder %s11, 3
      %p110 = pnand %p108, %p109
      %p111 = pneg %p110
      // Predicated region
      $region9: #{tpu_custom_call.1} parent=5 // pred_check
        _
      $region10: #{tpu_custom_call.1} parent=5 // pred_check_branch
        %113 = sbr.rel (%p110) target = $region12
      $region11: #{tpu_custom_call.1} parent=5 // pred_region
        %s114 = ssub.s32 %s11, 1
        // Predicated region
        $region13: #{tpu_custom_call.1} parent=11 // pred_check
          %p115 = pneg %p44
        $region14: #{tpu_custom_call.1} parent=11 // pred_check_branch
          %117 = sbr.rel (%p115) target = $region16
        $region15: #{tpu_custom_call.1} parent=11 // pred_region
          _
        $region16: #{tpu_custom_call.1} parent=11 // pred_fallthru
          _
      $region12: #{tpu_custom_call.1} parent=5 // pred_fallthru
        _
      %p118 = scmp.lt.s32.totalorder %s11, 2
      // Predicated region
      $region17: #{tpu_custom_call.1} parent=5 // pred_check
        %p119 = pneg %p118
      $region18: #{tpu_custom_call.1} parent=5 // pred_check_branch
        %121 = sbr.rel (%p119) target = $region20
      $region19: #{tpu_custom_call.1} parent=5 // pred_region
        // Predicated region
        $region21: #{tpu_custom_call.1} parent=19 // pred_check
          %p122 = pneg %p66
        $region22: #{tpu_custom_call.1} parent=19 // pred_check_branch
          %124 = sbr.rel (%p122) target = $region24
        $region23: #{tpu_custom_call.1} parent=19 // pred_region
          %p125 = scmp.lt.s32.totalorder %s18, 1
          %s126 = scalar_select %p125, %s18, 1
          %p127 = scmp.lt.s32.totalorder %s19, 0
          %s128 = scalar_select %p127, %s19, 0
          %s129 = smul.addr %s128, 2
          %s130 = smul.addr %s126, 2
          %s131 = sadd.s32 %s129, %s130
          %s132 = smul.addr %s131, 4
          %s133 = scalar_lea.vmem %s1, %s132
        $region24: #{tpu_custom_call.1} parent=19 // pred_fallthru
          _
      $region20: #{tpu_custom_call.1} parent=5 // pred_fallthru
        _
      %p134 = scmp.le.s32.totalorder 1, %s11
      %p135 = scmp.lt.s32.totalorder %s11, 3
      %p136 = pnand %p134, %p135
      %p137 = pneg %p136
      // Predicated region
      $region25: #{tpu_custom_call.1} parent=5 // pred_check
        _
      $region26: #{tpu_custom_call.1} parent=5 // pred_check_branch
        %139 = sbr.rel (%p136) target = $region28
      $region27: #{tpu_custom_call.1} parent=5 // pred_region
        %s140 = ssub.s32 %s11, 1
        %p141 = pneg %p44
        %p142 = pneg %p41
        %p143 = scmp.lt.s32.totalorder %s20, 1
        %s144 = scalar_select %p143, %s20, 1
        %p145 = scmp.lt.s32.totalorder %s21, 0
        %s146 = scalar_select %p145, %s21, 0
        %s147 = smul.addr %s146, 2
        %s148 = smul.addr %s144, 2
        %s149 = sadd.s32 %s147, %s148
        %s150 = smul.addr %s149, 4
        %s151 = scalar_lea.vmem %s1, %s150
        %p152 = pneg %p72
        %p153 = pneg %p69
        %p154 = pneg %p100
        %p155 = pneg %p97
        %s156 = sand.u32 %s87, 1
        %s157 = scalar_lea.sflag [#allocation3], %s156
        %s158 = sand.u32 %s87, 1
        %s159 = smul.addr %s158, 4
        %s160 = scalar_lea.vmem [#allocation2], %s159
        %p161 = scmp.lt.s32.totalorder %s20, 1
        %s162 = scalar_select %p161, %s20, 1
        %p163 = scmp.lt.s32.totalorder %s21, 0
        %s164 = scalar_select %p163, %s21, 0
        %s165 = smul.addr %s164, 2
        %s166 = smul.addr %s162, 2
        %s167 = sadd.s32 %s165, %s166
        %s168 = smul.addr %s167, 4
        %s169 = scalar_lea.vmem %s1, %s168
        %v170 = vld [vmem:[%s169] sm:$0xff]
        %v171 = vld [vmem:[%s0] sm:$0xff]
        %v172 = vld [vmem:[%s0 + $0x8] sm:$0xff]
        %v173 = vld [vmem:[%s0 + $0x10] sm:$0xff]
        %v174 = vld [vmem:[%s0 + $0x18] sm:$0xff]
        %v175 = vld [vmem:[%s0 + $0x20] sm:$0xff]
        %v176 = vld [vmem:[%s0 + $0x28] sm:$0xff]
        %v177 = vld [vmem:[%s0 + $0x30] sm:$0xff]
        %v178 = vld [vmem:[%s0 + $0x38] sm:$0xff]
        %v179 = vld [vmem:[%s0 + $0x40] sm:$0xff]
        %v180 = vld [vmem:[%s0 + $0x48] sm:$0xff]
        %v181 = vld [vmem:[%s0 + $0x50] sm:$0xff]
        %v182 = vld [vmem:[%s0 + $0x58] sm:$0xff]
        %v183 = vld [vmem:[%s0 + $0x60] sm:$0xff]
        %v184 = vld [vmem:[%s0 + $0x68] sm:$0xff]
        %v185 = vld [vmem:[%s0 + $0x70] sm:$0xff]
        %v186 = vld [vmem:[%s0 + $0x78] sm:$0xff]
        %v187 = vld [vmem:[%s0 + $0x80] sm:$0xff]
        %v188 = vld [vmem:[%s0 + $0x88] sm:$0xff]
        %v189 = vld [vmem:[%s0 + $0x90] sm:$0xff]
        %v190 = vld [vmem:[%s0 + $0x98] sm:$0xff]
        %v191 = vld [vmem:[%s0 + $0xa0] sm:$0xff]
        %v192 = vld [vmem:[%s0 + $0xa8] sm:$0xff]
        %v193 = vld [vmem:[%s0 + $0xb0] sm:$0xff]
        %v194 = vld [vmem:[%s0 + $0xb8] sm:$0xff]
        %v195 = vld [vmem:[%s0 + $0xc0] sm:$0xff]
        %v196 = vld [vmem:[%s0 + $0xc8] sm:$0xff]
        %v197 = vld [vmem:[%s0 + $0xd0] sm:$0xff]
        %v198 = vld [vmem:[%s0 + $0xd8] sm:$0xff]
        %v199 = vld [vmem:[%s0 + $0xe0] sm:$0xff]
        %v200 = vld [vmem:[%s0 + $0xe8] sm:$0xff]
        %v201 = vld [vmem:[%s0 + $0xf0] sm:$0xff]
        %v202 = vld [vmem:[%s0 + $0xf8] sm:$0xff]
        %v204 = vcombine.high %v170, %v170
        %206 = vmatprep.subr.mxu0 0.0
        %207 = vmatpush1.msra.mxu0 %v186
        %208 = vmatprep.subr.mxu0 0.0
        %209 = vmatpush1.msra.mxu0 %v185
        %210 = vmatprep.subr.mxu0 0.0
        %211 = vmatpush1.msra.mxu0 %v184
        %212 = vmatprep.subr.mxu0 0.0
        %213 = vmatpush1.msra.mxu0 %v183
        %214 = vmatprep.subr.mxu0 0.0
        %215 = vmatpush1.msra.mxu0 %v182
        %216 = vmatprep.subr.mxu0 0.0
        %217 = vmatpush1.msra.mxu0 %v181
        %218 = vmatprep.subr.mxu0 0.0
        %219 = vmatpush1.msra.mxu0 %v180
        %220 = vmatprep.subr.mxu0 0.0
        %221 = vmatpush1.msra.mxu0 %v179
        %222 = vmatprep.subr.mxu0 0.0
        %223 = vmatpush1.msra.mxu0 %v178
        %224 = vmatprep.subr.mxu0 0.0
        %225 = vmatpush1.msra.mxu0 %v177
        %226 = vmatprep.subr.mxu0 0.0
        %227 = vmatpush1.msra.mxu0 %v176
        %228 = vmatprep.subr.mxu0 0.0
        %229 = vmatpush1.msra.mxu0 %v175
        %230 = vmatprep.subr.mxu0 0.0
        %231 = vmatpush1.msra.mxu0 %v174
        %232 = vmatprep.subr.mxu0 0.0
        %233 = vmatpush1.msra.mxu0 %v173
        %234 = vmatprep.subr.mxu0 0.0
        %235 = vmatpush1.msra.mxu0 %v172
        %236 = vmatprep.subr.mxu0 0.0
        %237 = vmatpush1.msra.mxu0 %v171
        %238 = vmatprep.subr.mxu0 0.0
        %239 = vmatpush2.msra.mxu0 %v202
        %240 = vmatprep.subr.mxu0 0.0
        %241 = vmatpush2.msra.mxu0 %v201
        %242 = vmatprep.subr.mxu0 0.0
        %243 = vmatpush2.msra.mxu0 %v200
        %244 = vmatprep.subr.mxu0 0.0
        %245 = vmatpush2.msra.mxu0 %v199
        %246 = vmatprep.subr.mxu0 0.0
        %247 = vmatpush2.msra.mxu0 %v198
        %248 = vmatprep.subr.mxu0 0.0
        %249 = vmatpush2.msra.mxu0 %v197
        %250 = vmatprep.subr.mxu0 0.0
        %251 = vmatpush2.msra.mxu0 %v196
        %252 = vmatprep.subr.mxu0 0.0
        %253 = vmatpush2.msra.mxu0 %v195
        %254 = vmatprep.subr.mxu0 0.0
        %255 = vmatpush2.msra.mxu0 %v194
        %256 = vmatprep.subr.mxu0 0.0
        %257 = vmatpush2.msra.mxu0 %v193
        %258 = vmatprep.subr.mxu0 0.0
        %259 = vmatpush2.msra.mxu0 %v192
        %260 = vmatprep.subr.mxu0 0.0
        %261 = vmatpush2.msra.mxu0 %v191
        %262 = vmatprep.subr.mxu0 0.0
        %263 = vmatpush2.msra.mxu0 %v190
        %264 = vmatprep.subr.mxu0 0.0
        %265 = vmatpush2.msra.mxu0 %v189
        %266 = vmatprep.subr.mxu0 0.0
        %267 = vmatpush2.msra.mxu0 %v188
        %268 = vmatprep.subr.mxu0 0.0
        %269 = vmatpush2.msra.mxu0 %v187
        %270 = vmatprep.mubr.f32.mxu0 %v204
        %271 = vmatmul.mubr.f32.gmra.mxu0 %v170
        %v272 = vpop.f32.mrf.mxu0
        %v273 = vadd.f32 0.0, %v272
        %v274 = vpop.f32.mrf.mxu0
        %275 = vdwg.mxu0
        %vm276 = vcmask 519168
        %277 = vst.msk [vmem:[%s160] sm:$0xf] %vm276, %v273
        %s278 = sand.u32 %s87, 1
        %s279 = scalar_lea.sflag [#allocation3], %s278
        %s280 = sand.u32 %s87, 1
        %s281 = smul.addr %s280, 4
        %s282 = scalar_lea.vmem [#allocation2], %s281
        // Predicated region
        $region29: #{tpu_custom_call.1} parent=27 // pred_check
          %p283 = pneg %p97
        $region30: #{tpu_custom_call.1} parent=27 // pred_check_branch
          %285 = sbr.rel (%p283) target = $region32
        $region31: #{tpu_custom_call.1} parent=27 // pred_region
          %s287 = ssub.s32 64, 64
          %288 = vsyncadd %s279, %s287
          %s289 = sadd.s32 %s21, %s20
          %s290 = smul.addr %s289, 64
          %s291 = scalar_lea.hbm %s2, %s290
          %s293 = sshll.u32 %s282, 4
          %s294 = int_to_ptr.vmem [resolvable:$true] %s293
          %296 = dma.vmem_to_hbm [thread:$0]  %s294, 64, %s291, %s279
        $region32: #{tpu_custom_call.1} parent=27 // pred_fallthru
          _
      $region28: #{tpu_custom_call.1} parent=5 // pred_fallthru
        _
      %p297 = scmp.le.s32.totalorder 2, %s11
      // Predicated region
      $region33: #{tpu_custom_call.1} parent=5 // pred_check
        %p298 = pneg %p297
      $region34: #{tpu_custom_call.1} parent=5 // pred_check_branch
        %300 = sbr.rel (%p298) target = $region36
      $region35: #{tpu_custom_call.1} parent=5 // pred_region
        %s301 = ssub.s32 %s11, 2
        // Predicated region
        $region37: #{tpu_custom_call.1} parent=35 // pred_check
          %p302 = pneg %p103
        $region38: #{tpu_custom_call.1} parent=35 // pred_check_branch
          %304 = sbr.rel (%p302) target = $region40
        $region39: #{tpu_custom_call.1} parent=35 // pred_region
          %s305 = sand.u32 %s88, 1
          %s306 = scalar_lea.sflag [#allocation3], %s305
          %s307 = sand.u32 %s88, 1
          %s308 = smul.addr %s307, 4
          %s309 = scalar_lea.vmem [#allocation2], %s308
          %310 = dma.done %s306, 64
        $region40: #{tpu_custom_call.1} parent=35 // pred_fallthru
          _
      $region36: #{tpu_custom_call.1} parent=5 // pred_fallthru
        _
    $region6: #{tpu_custom_call.1} parent=1 // loop_footer
      %s15 = sadd.s32 1, %s11
    $region7: #{tpu_custom_call.1} parent=1 // loop_footer_branch
      %10 = sbr.rel target = $region3
    $region8: #{tpu_custom_call.1} parent=1 // loop_exit
      _
    %311 = vsyncpa [#allocation3], 1
    %s312 = scalar_lea.sflag [#allocation3], 1
    %313 = vsyncpa %s312, 1

</llo_original>
